<compile_context>
chip_gen: v5e
topology: v5e:2x2
jax: 0.10.0
libtpu: 0.0.40
codegen_flags: <defaults>
</compile_context>

<pallas_src>
import jax
import jax.numpy as jnp
from jax.experimental import pallas as pl
from jax.experimental.pallas import tpu as pltpu


def _cdiv(a, b):
    return (a + b - 1) // b


def _round_up(x, m):
    return _cdiv(x, m) * m


def _balanced_tile(dim, tile_max, align, min_tiles=1):
    """Tile size covering `dim` in >= min_tiles tiles of at most ~tile_max,
    aligned to `align`, minimizing padding waste (avoids ~2x pad blowups)."""
    nt = max(_cdiv(dim, tile_max), min_tiles)
    nt = min(nt, _cdiv(dim, align))          # never finer than one aligned chunk
    return _round_up(_cdiv(dim, nt), align)


def quantized_linear_kernel(scale_ref, zc_ref, x_ref, wt_ref, b_ref, o_ref):
    """One (tm, tn) output tile, accumulating over the K grid axis into o_ref."""
    k = pl.program_id(2)

    # int8 weight widened to bf16 (exact for int8 values) only at the MXU input.
    contrib = jnp.dot(x_ref[...], wt_ref[...].astype(jnp.bfloat16),
                      preferred_element_type=jnp.float32)

    @pl.when(k == 0)
    def _():
        o_ref[...] = contrib

    @pl.when(k > 0)
    def _():
        o_ref[...] = o_ref[...] + contrib

    @pl.when(k == pl.num_programs(2) - 1)
    def _():
        # Epilogue: scale, precomputed rank-1 zero-point correction, bias.
        o_ref[...] = scale_ref[0, 0] * o_ref[...] + zc_ref[...] + b_ref[...]


def prepare_quantized_linear(quantized_weight, bias, scale, zero_point,
                             *, expect_small_batch=True,
                             tn_max=512, tk_max=512):
    """One-time (model-init) layout of the quantized weight.

    quantized_weight: (N, K) int8, bias: (N,) float.
    Returns a params dict consumed by quantized_linear(); the transpose+pad is
    paid once here instead of on every forward call.
    """
    N, K = quantized_weight.shape
    assert bias.shape == (N,)

    # >= 2 output-column tiles keeps both v7x TensorCores busy on small-batch
    # (decode-like) calls where the row grid collapses to a single tile.
    min_n_tiles = 2 if (expect_small_batch and N > 128) else 1
    tn = _balanced_tile(N, tn_max, 128, min_tiles=min_n_tiles)
    tk = _balanced_tile(K, tk_max, 128)
    Np, Kp = _round_up(N, tn), _round_up(K, tk)

    # Weight presented as (Kp, Np) int8: N on lanes -> lane-dense output tiles,
    # canonical (tm,tk)x(tk,tn) MXU dot. Zero padding is exact for the folded
    # dequant (padded K rows multiply zero-padded x columns).
    wt = jnp.pad(quantized_weight.T, ((0, Kp - K), (0, Np - N)))
    b = jnp.pad(bias.astype(jnp.float32), (0, Np - N)).reshape(1, Np)

    return dict(
        wt=wt, bias=b,
        scale_arr=jnp.full((1, 1), scale, jnp.float32),        # SMEM scalar
        neg_scale_zp=float(-scale * zero_point),                # folded zp factor
        N=N, K=K, tn=tn, tk=tk,
    )


def quantized_linear(x, params, *, tm_max=512):
    """x: (M, K) float -> (M, N) float32, using pre-laid-out quantized weight."""
    M, K = x.shape
    assert K == params["K"]
    N, tn, tk = params["N"], params["tn"], params["tk"]
    wt, b = params["wt"], params["bias"]
    Kp, Np = wt.shape

    tm = _balanced_tile(M, tm_max, 8)
    Mp = _round_up(M, tm)

    # x laid out (Mp, Kp) bf16 (K on lanes). Zero-padded K columns contribute 0
    # to both the matmul and the row sums, so the zero-point fold stays exact.
    x_p = jnp.pad(x, ((0, Mp - M), (0, Kp - K))).astype(jnp.bfloat16)

    # Precomputed rank-1 zero-point correction: -scale*zp * rowsum(x)  (Mp, 1).
    # Computed over the same bf16 x the MXU sees, in f32, one cheap XLA pass.
    zp_corr = params["neg_scale_zp"] * jnp.sum(
        x_p.astype(jnp.float32), axis=1, keepdims=True)

    grid = (Mp // tm, Np // tn, Kp // tk)
    n_k = grid[2]

    # Deeper weight buffering when the K loop is deep (pure int8 weight
    # streaming regime); default double-buffering otherwise.
    if n_k >= 3:
        w_spec = pl.BlockSpec((tk, tn), lambda i, j, k: (k, j),
                              pipeline_mode=pl.Buffered(3))
    else:
        w_spec = pl.BlockSpec((tk, tn), lambda i, j, k: (k, j))

    out = pl.pallas_call(
        quantized_linear_kernel,
        out_shape=jax.ShapeDtypeStruct((Mp, Np), jnp.float32),
        grid=grid,
        in_specs=[
            pl.BlockSpec(memory_space=pltpu.MemorySpace.SMEM),   # scale (1,1)
            pl.BlockSpec((tm, 1), lambda i, j, k: (i, 0)),       # zp correction
            pl.BlockSpec((tm, tk), lambda i, j, k: (i, k)),      # x tile (bf16)
            w_spec,                                              # W^T tile (int8)
            pl.BlockSpec((1, tn), lambda i, j, k: (0, j)),       # bias tile
        ],
        out_specs=pl.BlockSpec((tm, tn), lambda i, j, k: (i, j)),
        compiler_params=pltpu.CompilerParams(
            dimension_semantics=("parallel", "parallel", "arbitrary"),
            vmem_limit_bytes=64 * 1024 * 1024),
    )(params["scale_arr"], zp_corr, x_p, wt, b)

    return out[:M, :N]


if __name__ == "__main__":
    key = jax.random.PRNGKey(0)
    k_x, k_w, k_b = jax.random.split(key, 3)

    # Small, non-128-aligned shapes to exercise padding, the tiled K loop and
    # the multi-tile N axis (grid = (1, 2, 2) with the default tile limits).
    batch = 24
    in_features = 1000
    out_features = 500

    x = jax.random.normal(k_x, (batch, in_features), dtype=jnp.float32)
    quantized_weight = jax.random.randint(
        k_w, (out_features, in_features), -128, 128, dtype=jnp.int32
    ).astype(jnp.int8)
    bias = jax.random.normal(k_b, (out_features,), dtype=jnp.float32)
    scale = 0.05
    zero_point = 3.0

    # One-time weight layout (model init) ...
    params = prepare_quantized_linear(quantized_weight, bias, scale, zero_point)
    # ... then the per-call path only pads x, builds the rank-1 correction and
    # runs the kernel.
    y = quantized_linear(x, params)
    y = jax.block_until_ready(y)

    # Pure-JAX reference (mirrors the PyTorch forward exactly, full f32).
    dequant_w = (quantized_weight.astype(jnp.float32) - zero_point) * scale
    y_ref = jnp.dot(x, dequant_w.T, precision=jax.lax.Precision.HIGHEST) + bias

    assert y.shape == (batch, out_features)
    # Kernel uses bf16 matmul operands (x rounded to bf16; int8 weights are
    # exact in bf16), so tolerance is relaxed vs. the f32 reference.
    max_err = float(jnp.max(jnp.abs(y - y_ref)))
    assert jnp.allclose(y, y_ref, rtol=2e-2, atol=1.5), max_err
    print("KERNEL_OK")
</pallas_src>

<mosaic_0001>
module attributes {stable_mosaic.version = 11 : i64} {
  func.func @quantized_linear_kernel(%arg0: i32, %arg1: i32, %arg2: i32, %arg3: memref<1x1xf32, #tpu.memory_space<smem>>, %arg4: memref<24x1xf32, #tpu.memory_space<vmem>>, %arg5: memref<24x512xbf16, #tpu.memory_space<vmem>>, %arg6: memref<512x256xi8, #tpu.memory_space<vmem>>, %arg7: memref<1x256xf32, #tpu.memory_space<vmem>>, %arg8: memref<24x256xf32, #tpu.memory_space<vmem>>) attributes {dimension_semantics = [#tpu.dimension_semantics<parallel>, #tpu.dimension_semantics<parallel>, #tpu.dimension_semantics<arbitrary>], iteration_bounds = array<i64: 1, 2, 2>, scalar_prefetch = 0 : i64, scratch_operands = 0 : i64, tpu.core_type = #tpu.core_type<tc>, window_params = [{transform_indices = @transform_0, window_bounds = array<i64: 1, 1>}, {transform_indices = @transform_1, window_bounds = array<i64: 24, 1>}, {transform_indices = @transform_2, window_bounds = array<i64: 24, 512>}, {transform_indices = @transform_3, window_bounds = array<i64: 512, 256>}, {transform_indices = @transform_4, window_bounds = array<i64: 1, 256>}, {transform_indices = @transform_5, window_bounds = array<i64: 24, 256>}]} {
    %c0 = arith.constant 0 : index
    %c0_0 = arith.constant 0 : index
    %0 = vector.load %arg5[%c0, %c0_0] : memref<24x512xbf16, #tpu.memory_space<vmem>>, vector<24x512xbf16>
    %c0_1 = arith.constant 0 : index
    %c0_2 = arith.constant 0 : index
    %1 = vector.load %arg6[%c0_1, %c0_2] : memref<512x256xi8, #tpu.memory_space<vmem>>, vector<512x256xi8>
    %2 = arith.sitofp %1 : vector<512x256xi8> to vector<512x256xbf16>
    %cst = arith.constant dense<0.000000e+00> : vector<24x256xf32>
    %3 = tpu.matmul %0, %2, %cst {dimension_numbers = #tpu.dot_dimension_numbers<[1], [0], [0], [1], [0, 0, 1, 1], [], []>} : vector<24x512xbf16>, vector<512x256xbf16>, vector<24x256xf32> -> vector<24x256xf32>
    %c0_i32 = arith.constant 0 : i32
    %4 = arith.cmpi eq, %arg2, %c0_i32 : i32
    %5 = arith.extui %4 : i1 to i32
    %c0_i32_3 = arith.constant 0 : i32
    %6 = arith.cmpi ne, %5, %c0_i32_3 : i32
    scf.if %6 {
      %c0_7 = arith.constant 0 : index
      %c0_8 = arith.constant 0 : index
      %13 = vector.load %arg8[%c0_7, %c0_8] : memref<24x256xf32, #tpu.memory_space<vmem>>, vector<24x256xf32>
      tpu.vector_store %arg8[%c0_7, %c0_8], %3 {strides = array<i32>} : memref<24x256xf32, #tpu.memory_space<vmem>>, vector<24x256xf32>,
    } else {
    }
    %c0_i32_4 = arith.constant 0 : i32
    %7 = arith.cmpi sgt, %arg2, %c0_i32_4 : i32
    %8 = arith.extui %7 : i1 to i32
    %c0_i32_5 = arith.constant 0 : i32
    %9 = arith.cmpi ne, %8, %c0_i32_5 : i32
    scf.if %9 {
      %c0_7 = arith.constant 0 : index
      %c0_8 = arith.constant 0 : index
      %13 = vector.load %arg8[%c0_7, %c0_8] : memref<24x256xf32, #tpu.memory_space<vmem>>, vector<24x256xf32>
      %14 = arith.addf %13, %3 : vector<24x256xf32>
      %c0_9 = arith.constant 0 : index
      %c0_10 = arith.constant 0 : index
      %15 = vector.load %arg8[%c0_9, %c0_10] : memref<24x256xf32, #tpu.memory_space<vmem>>, vector<24x256xf32>
      tpu.vector_store %arg8[%c0_9, %c0_10], %14 {strides = array<i32>} : memref<24x256xf32, #tpu.memory_space<vmem>>, vector<24x256xf32>,
    } else {
    }
    %c1_i32 = arith.constant 1 : i32
    %10 = arith.cmpi eq, %arg2, %c1_i32 : i32
    %11 = arith.extui %10 : i1 to i32
    %c0_i32_6 = arith.constant 0 : i32
    %12 = arith.cmpi ne, %11, %c0_i32_6 : i32
    scf.if %12 {
      %c0_7 = arith.constant 0 : index
      %c0_8 = arith.constant 0 : index
      %13 = memref.load %arg3[%c0_7, %c0_8] : memref<1x1xf32, #tpu.memory_space<smem>>
      %c0_9 = arith.constant 0 : index
      %c0_10 = arith.constant 0 : index
      %14 = vector.load %arg8[%c0_9, %c0_10] : memref<24x256xf32, #tpu.memory_space<vmem>>, vector<24x256xf32>
      %15 = vector.broadcast %13 : f32 to vector<24x256xf32>
      %16 = arith.mulf %15, %14 : vector<24x256xf32>
      %c0_11 = arith.constant 0 : index
      %c0_12 = arith.constant 0 : index
      %17 = vector.load %arg4[%c0_11, %c0_12] : memref<24x1xf32, #tpu.memory_space<vmem>>, vector<24x1xf32>
      %18 = vector.broadcast %17 : vector<24x1xf32> to vector<24x256xf32>
      %19 = arith.addf %16, %18 : vector<24x256xf32>
      %c0_13 = arith.constant 0 : index
      %c0_14 = arith.constant 0 : index
      %20 = vector.load %arg7[%c0_13, %c0_14] : memref<1x256xf32, #tpu.memory_space<vmem>>, vector<1x256xf32>
      %21 = vector.broadcast %20 : vector<1x256xf32> to vector<24x256xf32>
      %22 = arith.addf %19, %21 : vector<24x256xf32>
      %c0_15 = arith.constant 0 : index
      %c0_16 = arith.constant 0 : index
      %23 = vector.load %arg8[%c0_15, %c0_16] : memref<24x256xf32, #tpu.memory_space<vmem>>, vector<24x256xf32>
      tpu.vector_store %arg8[%c0_15, %c0_16], %22 {strides = array<i32>} : memref<24x256xf32, #tpu.memory_space<vmem>>, vector<24x256xf32>,
    } else {
    }
    return
  }
  func.func @transform_0(%arg0: i32, %arg1: i32, %arg2: i32) -> (i32, i32) {
    %c0_i32 = arith.constant 0 : i32
    %c0_i32_0 = arith.constant 0 : i32
    %c0_i32_1 = arith.constant 0 : i32
    return %c0_i32, %c0_i32_0 : i32, i32
  }
  func.func @transform_1(%arg0: i32, %arg1: i32, %arg2: i32) -> (i32, i32) {
    %c0_i32 = arith.constant 0 : i32
    %c0_i32_0 = arith.constant 0 : i32
    return %arg0, %c0_i32 : i32, i32
  }
  func.func @transform_2(%arg0: i32, %arg1: i32, %arg2: i32) -> (i32, i32) {
    %c0_i32 = arith.constant 0 : i32
    return %arg0, %arg2 : i32, i32
  }
  func.func @transform_3(%arg0: i32, %arg1: i32, %arg2: i32) -> (i32, i32) {
    %c0_i32 = arith.constant 0 : i32
    return %arg2, %arg1 : i32, i32
  }
  func.func @transform_4(%arg0: i32, %arg1: i32, %arg2: i32) -> (i32, i32) {
    %c0_i32 = arith.constant 0 : i32
    %c0_i32_0 = arith.constant 0 : i32
    return %c0_i32, %arg1 : i32, i32
  }
  func.func @transform_5(%arg0: i32, %arg1: i32, %arg2: i32) -> (i32, i32) {
    %c0_i32 = arith.constant 0 : i32
    return %arg0, %arg1 : i32, i32
  }
}

</mosaic_0001>

<llo_original>
// kernel: tpu_custom_call.1
$region0: #{tpu_custom_call.1}
  #allocation0 [shape = 'u32[]', space=smem, size = 0x4, offset = 0x4, fixed_abs, tag = 'smem constant byte address 0x4 - core index']
  #allocation1 [shape = 'u32[72,128]{1,0:T(1,128)}', space=vmem, size = 0x9000, scoped, tag = 'internal scratch']
  #allocation2 [shape = 'f32[1,1]{1,0:T(1,128)S(6)}', space=smem, size = 0x200, scoped, tag = 'scoped memory for tpu_custom_call.1']
  %s0 = inlined_call_operand.<no memory space> [shape: f32[1,1], index: 0, kind: input, shape index: {}]
  %s1 = inlined_call_operand.vmem [shape: f32[24,1], index: 1, kind: input, shape index: {}]
  %s2 = inlined_call_operand.hbm [shape: bf16[24,1024], index: 2, kind: input, shape index: {}]
  %s3 = inlined_call_operand.hbm [shape: s8[1024,512], index: 3, kind: input, shape index: {}]
  %s4 = inlined_call_operand.vmem [shape: f32[1,512], index: 4, kind: input, shape index: {}]
  %s5 = inlined_call_operand.hbm [shape: f32[24,512], index: 5, kind: output, shape index: {}]
  %s6 = sld [smem:[#allocation0]]
  $region73: #{tpu_custom_call.1} parent=0
    _
  %s8 = ssub.s32 1, %s6
  %s9 = scalar_select 0, %s8, %s6
  %10 = sst [smem:[#allocation2]] %s0
  $region1: #{tpu_custom_call.1} parent=0
    #allocation3 [shape = 'u8[49152]{0}', space=vmem, size = 0xc000, scoped, tag = 'input window, operand 2']
    #allocation4 [shape = 's32[2]{0}', space=sflag, size = 0x8, scoped, tag = 'scoped memory for tpu_custom_call.1']
    #allocation5 [shape = 's32[2]{0}', space=sflag, size = 0x8, scoped, tag = 'scoped memory for tpu_custom_call.1']
    #allocation6 [shape = 'u8[262144]{0}', space=vmem, size = 0x40000, scoped, tag = 'input window, operand 3']
    #allocation7 [shape = 's32[2]{0}', space=sflag, size = 0x8, scoped, tag = 'scoped memory for tpu_custom_call.1']
    #allocation8 [shape = 'u8[49152]{0}', space=vmem, size = 0xc000, scoped, tag = 'output window, operand 0']
    %11 = vsyncpa [#allocation4], 0
    %s12 = scalar_lea.sflag [#allocation4], 1
    %13 = vsyncpa %s12, 0
    %14 = vsyncpa [#allocation7], 0
    %s15 = scalar_lea.sflag [#allocation7], 1
    %16 = vsyncpa %s15, 0
    %17 = vsyncpa [#allocation5], 0
    %s18 = scalar_lea.sflag [#allocation5], 1
    %19 = vsyncpa %s18, 0
    loop: start=0, step=1, limit=6
    $region2: #{tpu_custom_call.1} parent=1 // loop_pre_header
      _
    $region3: #{tpu_custom_call.1} parent=1 // loop_header
      %s21 = sphi 0, %s25
      %p22 = scmp.ge.s32.totalorder %s21, 6
      %s28 = sphi 0, %s47
      %s29 = sphi 0, %s43
      %s30 = sphi 0, %s39
      %s31 = sphi 0, %s28
      %s32 = sphi 0, %s29
      %s33 = sphi 0, %s30
      %s34 = sphi 0, %s31
      %s35 = sphi 0, %s32
      %s36 = sphi 0, %s33
      %s48 = sphi 0, %s48
      %s50 = sphi 0, %s48
      %s51 = sphi 0, %s50
      %s65 = sphi 0, %s51
      %s71 = sphi 0, %s73
      %s74 = sphi 0, %s71
      %s75 = sphi 0, %s74
      %s91 = sphi 0, %s75
      %s99 = sphi 0, %s101
      %s102 = sphi 0, %s99
      %s103 = sphi 0, %s102
      %s119 = sphi 0, %s103
      %s127 = sphi 0, %s129
      %s130 = sphi 0, %s127
      %s131 = sphi 0, %s130
      %s147 = sphi 0, %s131
      %s153 = sphi 0, %s155
      %s156 = sphi 0, %s153
      %s157 = sphi 0, %s156
      %s173 = sphi 0, %s157
      %s181 = sphi 0, %s183
      %s184 = sphi 0, %s181
      %s185 = sphi 0, %s184
      %s201 = sphi 0, %s185
    $region4: #{tpu_custom_call.1} parent=1 // loop_header_branch
      %24 = sbr.rel (%p22) target = $region8
    $region5: #{tpu_custom_call.1} parent=1 // loop_body
      %s26 = ssub.s32 %s21, 1
      %s27 = ssub.s32 %s21, 2
      %s37 = sadd.s32 1, %s30
      %p38 = scmp.ge.s32.totalorder %s37, 2
      %s39 = scalar_select %p38, 0, %s37
      %s40 = sadd.s32 1, %s29
      %s41 = scalar_select %p38, %s40, %s29
      %p42 = scmp.ge.s32.totalorder %s41, 2
      %s43 = scalar_select %p42, 0, %s41
      %s44 = sadd.s32 1, %s28
      %s45 = scalar_select %p42, %s44, %s28
      %p46 = scmp.ge.s32.totalorder %s45, 1
      %s47 = scalar_select %p46, 0, %s45
      %s49 = sadd.s32 %s48, 1
      %p52 = scmp.eq.s32.totalorder %s21, 3
      %p53 = scmp.ne.s32.totalorder %s48, %s50
      %p54 = scmp.eq.s32.totalorder %s21, 0
      %p55 = por %p53, %p54
      %p56 = scmp.ne.s32.totalorder %s48, %s50
      %p57 = scmp.eq.s32.totalorder %s26, 3
      %p58 = por %p56, %p57
      %p59 = scmp.ne.s32.totalorder %s50, %s51
      %p60 = scmp.eq.s32.totalorder %s26, 0
      %p61 = por %p59, %p60
      %p62 = scmp.ne.s32.totalorder %s50, %s51
      %p63 = scmp.eq.s32.totalorder %s27, 3
      %p64 = por %p62, %p63
      %p66 = scmp.ne.s32.totalorder %s51, %s65
      %p67 = scmp.eq.s32.totalorder %s27, 0
      %p68 = por %p66, %p67
      %s69 = ssub.s32 %s28, %s47
      %p70 = scmp.eq.s32.totalorder %s69, 0
      %s72 = sadd.s32 %s71, 1
      %s73 = scalar_select %p70, %s71, %s72
      %p76 = pneg %p70
      %p77 = scmp.eq.s32.totalorder %s21, 3
      %p78 = por %p76, %p77
      %p79 = scmp.ne.s32.totalorder %s71, %s74
      %p80 = scmp.eq.s32.totalorder %s21, 0
      %p81 = por %p79, %p80
      %p82 = scmp.ne.s32.totalorder %s71, %s74
      %p83 = scmp.eq.s32.totalorder %s26, 3
      %p84 = por %p82, %p83
      %p85 = scmp.ne.s32.totalorder %s74, %s75
      %p86 = scmp.eq.s32.totalorder %s26, 0
      %p87 = por %p85, %p86
      %p88 = scmp.ne.s32.totalorder %s74, %s75
      %p89 = scmp.eq.s32.totalorder %s27, 3
      %p90 = por %p88, %p89
      %p92 = scmp.ne.s32.totalorder %s75, %s91
      %p93 = scmp.eq.s32.totalorder %s27, 0
      %p94 = por %p92, %p93
      %s95 = ssub.s32 %s28, %s47
      %s96 = ssub.s32 %s30, %s39
      %s97 = sor.u32 %s95, %s96
      %p98 = scmp.eq.s32.totalorder %s97, 0
      %s100 = sadd.s32 %s99, 1
      %s101 = scalar_select %p98, %s99, %s100
      %p104 = pneg %p98
      %p105 = scmp.eq.s32.totalorder %s21, 3
      %p106 = por %p104, %p105
      %p107 = scmp.ne.s32.totalorder %s99, %s102
      %p108 = scmp.eq.s32.totalorder %s21, 0
      %p109 = por %p107, %p108
      %p110 = scmp.ne.s32.totalorder %s99, %s102
      %p111 = scmp.eq.s32.totalorder %s26, 3
      %p112 = por %p110, %p111
      %p113 = scmp.ne.s32.totalorder %s102, %s103
      %p114 = scmp.eq.s32.totalorder %s26, 0
      %p115 = por %p113, %p114
      %p116 = scmp.ne.s32.totalorder %s102, %s103
      %p117 = scmp.eq.s32.totalorder %s27, 3
      %p118 = por %p116, %p117
      %p120 = scmp.ne.s32.totalorder %s103, %s119
      %p121 = scmp.eq.s32.totalorder %s27, 0
      %p122 = por %p120, %p121
      %s123 = ssub.s32 %s30, %s39
      %s124 = ssub.s32 %s29, %s43
      %s125 = sor.u32 %s123, %s124
      %p126 = scmp.eq.s32.totalorder %s125, 0
      %s128 = sadd.s32 %s127, 1
      %s129 = scalar_select %p126, %s127, %s128
      %p132 = pneg %p126
      %p133 = scmp.eq.s32.totalorder %s21, 3
      %p134 = por %p132, %p133
      %p135 = scmp.ne.s32.totalorder %s127, %s130
      %p136 = scmp.eq.s32.totalorder %s21, 0
      %p137 = por %p135, %p136
      %p138 = scmp.ne.s32.totalorder %s127, %s130
      %p139 = scmp.eq.s32.totalorder %s26, 3
      %p140 = por %p138, %p139
      %p141 = scmp.ne.s32.totalorder %s130, %s131
      %p142 = scmp.eq.s32.totalorder %s26, 0
      %p143 = por %p141, %p142
      %p144 = scmp.ne.s32.totalorder %s130, %s131
      %p145 = scmp.eq.s32.totalorder %s27, 3
      %p146 = por %p144, %p145
      %p148 = scmp.ne.s32.totalorder %s131, %s147
      %p149 = scmp.eq.s32.totalorder %s27, 0
      %p150 = por %p148, %p149
      %s151 = ssub.s32 %s29, %s43
      %p152 = scmp.eq.s32.totalorder %s151, 0
      %s154 = sadd.s32 %s153, 1
      %s155 = scalar_select %p152, %s153, %s154
      %p158 = pneg %p152
      %p159 = scmp.eq.s32.totalorder %s21, 3
      %p160 = por %p158, %p159
      %p161 = scmp.ne.s32.totalorder %s153, %s156
      %p162 = scmp.eq.s32.totalorder %s21, 0
      %p163 = por %p161, %p162
      %p164 = scmp.ne.s32.totalorder %s153, %s156
      %p165 = scmp.eq.s32.totalorder %s26, 3
      %p166 = por %p164, %p165
      %p167 = scmp.ne.s32.totalorder %s156, %s157
      %p168 = scmp.eq.s32.totalorder %s26, 0
      %p169 = por %p167, %p168
      %p170 = scmp.ne.s32.totalorder %s156, %s157
      %p171 = scmp.eq.s32.totalorder %s27, 3
      %p172 = por %p170, %p171
      %p174 = scmp.ne.s32.totalorder %s157, %s173
      %p175 = scmp.eq.s32.totalorder %s27, 0
      %p176 = por %p174, %p175
      %s177 = ssub.s32 %s28, %s47
      %s178 = ssub.s32 %s29, %s43
      %s179 = sor.u32 %s177, %s178
      %p180 = scmp.eq.s32.totalorder %s179, 0
      %s182 = sadd.s32 %s181, 1
      %s183 = scalar_select %p180, %s181, %s182
      %p186 = pneg %p180
      %p187 = scmp.eq.s32.totalorder %s21, 3
      %p188 = por %p186, %p187
      %p189 = scmp.ne.s32.totalorder %s181, %s184
      %p190 = scmp.eq.s32.totalorder %s21, 0
      %p191 = por %p189, %p190
      %p192 = scmp.ne.s32.totalorder %s181, %s184
      %p193 = scmp.eq.s32.totalorder %s26, 3
      %p194 = por %p192, %p193
      %p195 = scmp.ne.s32.totalorder %s184, %s185
      %p196 = scmp.eq.s32.totalorder %s26, 0
      %p197 = por %p195, %p196
      %p198 = scmp.ne.s32.totalorder %s184, %s185
      %p199 = scmp.eq.s32.totalorder %s27, 3
      %p200 = por %p198, %p199
      %p202 = scmp.ne.s32.totalorder %s185, %s201
      %p203 = scmp.eq.s32.totalorder %s27, 0
      %p204 = por %p202, %p203
      %p205 = scmp.le.s32.totalorder 1, %s21
      %p206 = scmp.lt.s32.totalorder %s21, 5
      %p207 = pnand %p205, %p206
      %p208 = pneg %p207
      // Predicated region
      $region9: #{tpu_custom_call.1} parent=5 // pred_check
        _
      $region10: #{tpu_custom_call.1} parent=5 // pred_check_branch
        %210 = sbr.rel (%p207) target = $region12
      $region11: #{tpu_custom_call.1} parent=5 // pred_region
        %s211 = ssub.s32 %s21, 1
        // Predicated region
        $region13: #{tpu_custom_call.1} parent=11 // pred_check
          %p212 = pneg %p61
        $region14: #{tpu_custom_call.1} parent=11 // pred_check_branch
          %214 = sbr.rel (%p212) target = $region16
        $region15: #{tpu_custom_call.1} parent=11 // pred_region
          _
        $region16: #{tpu_custom_call.1} parent=11 // pred_fallthru
          _
        // Predicated region
        $region17: #{tpu_custom_call.1} parent=11 // pred_check
          %p215 = pneg %p87
        $region18: #{tpu_custom_call.1} parent=11 // pred_check_branch
          %217 = sbr.rel (%p215) target = $region20
        $region19: #{tpu_custom_call.1} parent=11 // pred_region
          %s218 = smul.u32 3, %s31
          %p219 = scmp.lt.s32.totalorder %s218, 2
          %s220 = scalar_select %p219, %s218, 2
          %s221 = smul.addr %s220, 8
          %s222 = scalar_lea.vmem %s1, %s221
          %s223 = smul.u32 3, %s31
        $region20: #{tpu_custom_call.1} parent=11 // pred_fallthru
          _
      $region12: #{tpu_custom_call.1} parent=5 // pred_fallthru
        _
      %p224 = scmp.lt.s32.totalorder %s21, 4
      // Predicated region
      $region21: #{tpu_custom_call.1} parent=5 // pred_check
        %p225 = pneg %p224
      $region22: #{tpu_custom_call.1} parent=5 // pred_check_branch
        %227 = sbr.rel (%p225) target = $region24
      $region23: #{tpu_custom_call.1} parent=5 // pred_region
        // Predicated region
        $region25: #{tpu_custom_call.1} parent=23 // pred_check
          %p228 = pneg %p109
        $region26: #{tpu_custom_call.1} parent=23 // pred_check_branch
          %230 = sbr.rel (%p228) target = $region28
        $region27: #{tpu_custom_call.1} parent=23 // pred_region
          %s231 = sand.u32 %s99, 1
          %s232 = scalar_lea.sflag [#allocation4], %s231
          %s233 = sand.u32 %s99, 1
          %s234 = smul.addr %s233, 48
          %s235 = scalar_lea.vmem [#allocation3], %s234
          %s236 = smul.u32 3, %s28
          %s237 = smul.u32 4, %s30
          %239 = vsyncadd %s232, 0
          %s240 = smul.addr %s236, 8
          %s241 = sadd.s32 %s237, %s240
          %s242 = smul.addr %s241, 4
          %s243 = scalar_lea.hbm %s2, %s242
          %s244 = sshll.u32 %s243, 4
          %s245 = int_to_ptr.hbm [resolvable:$true] %s244
          %s246 = sshll.u32 %s235, 4
          %s247 = int_to_ptr.vmem [resolvable:$true] %s246
          %252 = dma.hbm_to_vmem [thread:$0]  %s245, 768, %s247, %s232, 512, 256, 16
        $region28: #{tpu_custom_call.1} parent=23 // pred_fallthru
          _
        // Predicated region
        $region29: #{tpu_custom_call.1} parent=23 // pred_check
          %p253 = pneg %p137
        $region30: #{tpu_custom_call.1} parent=23 // pred_check_branch
          %255 = sbr.rel (%p253) target = $region32
        $region31: #{tpu_custom_call.1} parent=23 // pred_region
          %s256 = sand.u32 %s127, 1
          %s257 = scalar_lea.sflag [#allocation7], %s256
          %s258 = sand.u32 %s127, 1
          %s259 = smul.addr %s258, 256
          %s260 = scalar_lea.vmem [#allocation6], %s259
          %s261 = smul.u32 16, %s30
          %s262 = smul.u32 2, %s29
          %264 = vsyncadd %s257, 0
          %s265 = smul.addr %s261, 4
          %s266 = sadd.s32 %s262, %s265
          %s267 = smul.addr %s266, 8
          %s268 = scalar_lea.hbm %s3, %s267
          %s269 = sshll.u32 %s268, 4
          %s270 = int_to_ptr.hbm [resolvable:$true] %s269
          %s271 = sshll.u32 %s260, 4
          %s272 = int_to_ptr.vmem [resolvable:$true] %s271
          %277 = dma.hbm_to_vmem [thread:$0]  %s270, 4096, %s272, %s257, 512, 256, 16
        $region32: #{tpu_custom_call.1} parent=23 // pred_fallthru
          _
        // Predicated region
        $region33: #{tpu_custom_call.1} parent=23 // pred_check
          %p278 = pneg %p163
        $region34: #{tpu_custom_call.1} parent=23 // pred_check_branch
          %280 = sbr.rel (%p278) target = $region36
        $region35: #{tpu_custom_call.1} parent=23 // pred_region
          %s281 = smul.u32 2, %s29
          %p282 = scmp.lt.s32.totalorder %s281, 3
          %s283 = scalar_select %p282, %s281, 3
          %s284 = scalar_lea.vmem %s4, %s283
          %s285 = smul.u32 2, %s29
        $region36: #{tpu_custom_call.1} parent=23 // pred_fallthru
          _
      $region24: #{tpu_custom_call.1} parent=5 // pred_fallthru
        _
      %p286 = scmp.le.s32.totalorder 1, %s21
      %p287 = scmp.lt.s32.totalorder %s21, 5
      %p288 = pnand %p286, %p287
      %p289 = pneg %p288
      // Predicated region
      $region37: #{tpu_custom_call.1} parent=5 // pred_check
        _
      $region38: #{tpu_custom_call.1} parent=5 // pred_check_branch
        %291 = sbr.rel (%p288) target = $region40
      $region39: #{tpu_custom_call.1} parent=5 // pred_region
        %s292 = ssub.s32 %s21, 1
        %s293 = sand.u32 %s102, 1
        %s294 = scalar_lea.sflag [#allocation4], %s293
        %s295 = sand.u32 %s102, 1
        %s296 = smul.addr %s295, 48
        %s297 = scalar_lea.vmem [#allocation3], %s296
        // Predicated region
        $region41: #{tpu_custom_call.1} parent=39 // pred_check
          %p298 = pneg %p115
        $region42: #{tpu_custom_call.1} parent=39 // pred_check_branch
          %300 = sbr.rel (%p298) target = $region44
        $region43: #{tpu_custom_call.1} parent=39 // pred_region
          %302 = dma.done %s294, 768
        $region44: #{tpu_custom_call.1} parent=39 // pred_fallthru
          _
        %s303 = sand.u32 %s130, 1
        %s304 = scalar_lea.sflag [#allocation7], %s303
        %s305 = sand.u32 %s130, 1
        %s306 = smul.addr %s305, 256
        %s307 = scalar_lea.vmem [#allocation6], %s306
        // Predicated region
        $region45: #{tpu_custom_call.1} parent=39 // pred_check
          %p308 = pneg %p143
        $region46: #{tpu_custom_call.1} parent=39 // pred_check_branch
          %310 = sbr.rel (%p308) target = $region48
        $region47: #{tpu_custom_call.1} parent=39 // pred_region
          %312 = dma.done %s304, 4096
        $region48: #{tpu_custom_call.1} parent=39 // pred_fallthru
          _
        %p313 = pneg %p61
        %p314 = pneg %p58
        %s315 = smul.u32 3, %s31
        %p316 = scmp.lt.s32.totalorder %s315, 2
        %s317 = scalar_select %p316, %s315, 2
        %s318 = smul.addr %s317, 8
        %s319 = scalar_lea.vmem %s1, %s318
        %p320 = pneg %p87
        %p321 = pneg %p84
        %s322 = sand.u32 %s102, 1
        %s323 = scalar_lea.sflag [#allocation4], %s322
        %s324 = sand.u32 %s102, 1
        %s325 = smul.addr %s324, 48
        %s326 = scalar_lea.vmem [#allocation3], %s325
        %p327 = pneg %p115
        %p328 = pneg %p112
        %s329 = sand.u32 %s130, 1
        %s330 = scalar_lea.sflag [#allocation7], %s329
        %s331 = sand.u32 %s130, 1
        %s332 = smul.addr %s331, 256
        %s333 = scalar_lea.vmem [#allocation6], %s332
        %p334 = pneg %p143
        %p335 = pneg %p140
        %s336 = smul.u32 2, %s32
        %p337 = scmp.lt.s32.totalorder %s336, 3
        %s338 = scalar_select %p337, %s336, 3
        %s339 = scalar_lea.vmem %s4, %s338
        %p340 = pneg %p169
        %p341 = pneg %p166
        %p342 = pneg %p197
        %p343 = pneg %p194
        %s344 = sand.u32 %s184, 1
        %s345 = scalar_lea.sflag [#allocation5], %s344
        %s346 = sand.u32 %s184, 1
        %s347 = smul.addr %s346, 48
        %s348 = scalar_lea.vmem [#allocation8], %s347
        %s349 = smul.u32 3, %s31
        %p350 = scmp.lt.s32.totalorder %s349, 2
        %s351 = scalar_select %p350, %s349, 2
        %s352 = smul.addr %s351, 8
        %s353 = scalar_lea.vmem %s1, %s352
        %s354 = smul.u32 3, %s31
        %s355 = smul.u32 3, %s31
        %s356 = smul.u32 4, %s33
        %s357 = smul.u32 16, %s33
        %s358 = smul.u32 2, %s32
        %s359 = smul.u32 2, %s32
        %p360 = scmp.lt.s32.totalorder %s359, 3
        %s361 = scalar_select %p360, %s359, 3
        %s362 = scalar_lea.vmem %s4, %s361
        %s363 = smul.u32 2, %s32
        %s364 = smul.u32 3, %s31
        %s365 = smul.u32 2, %s32
        %v366 = vld [vmem:[%s297] sm:$0xff]
        %v367 = vld [vmem:[%s297 + $0x8] sm:$0xff]
        %v368 = vld [vmem:[%s297 + $0x10] sm:$0xff]
        %v369 = vld [vmem:[%s297 + $0x18] sm:$0xff]
        %v370 = vld [vmem:[%s297 + $0x20] sm:$0xff]
        %v371 = vld [vmem:[%s297 + $0x28] sm:$0xff]
        %v372 = vld [vmem:[%s307] sm:$0xff]
        %v373 = vld [vmem:[%s307 + $0x8] sm:$0xff]
        %v374 = vld [vmem:[%s307 + $0x10] sm:$0xff]
        %v375 = vld [vmem:[%s307 + $0x18] sm:$0xff]
        %v376 = vld [vmem:[%s307 + $0x20] sm:$0xff]
        %v377 = vld [vmem:[%s307 + $0x28] sm:$0xff]
        %v378 = vld [vmem:[%s307 + $0x30] sm:$0xff]
        %v379 = vld [vmem:[%s307 + $0x38] sm:$0xff]
        %v380 = vld [vmem:[%s307 + $0x40] sm:$0xff]
        %v381 = vld [vmem:[%s307 + $0x48] sm:$0xff]
        %v382 = vld [vmem:[%s307 + $0x50] sm:$0xff]
        %v383 = vld [vmem:[%s307 + $0x58] sm:$0xff]
        %v384 = vld [vmem:[%s307 + $0x60] sm:$0xff]
        %v385 = vld [vmem:[%s307 + $0x68] sm:$0xff]
        %v386 = vld [vmem:[%s307 + $0x70] sm:$0xff]
        %v387 = vld [vmem:[%s307 + $0x78] sm:$0xff]
        %v388 = vld [vmem:[%s307 + $0x80] sm:$0xff]
        %v389 = vld [vmem:[%s307 + $0x88] sm:$0xff]
        %v390 = vld [vmem:[%s307 + $0x90] sm:$0xff]
        %v391 = vld [vmem:[%s307 + $0x98] sm:$0xff]
        %v392 = vld [vmem:[%s307 + $0xa0] sm:$0xff]
        %v393 = vld [vmem:[%s307 + $0xa8] sm:$0xff]
        %v394 = vld [vmem:[%s307 + $0xb0] sm:$0xff]
        %v395 = vld [vmem:[%s307 + $0xb8] sm:$0xff]
        %v396 = vld [vmem:[%s307 + $0xc0] sm:$0xff]
        %v397 = vld [vmem:[%s307 + $0xc8] sm:$0xff]
        %v398 = vld [vmem:[%s307 + $0xd0] sm:$0xff]
        %v399 = vld [vmem:[%s307 + $0xd8] sm:$0xff]
        %v400 = vld [vmem:[%s307 + $0xe0] sm:$0xff]
        %v401 = vld [vmem:[%s307 + $0xe8] sm:$0xff]
        %v402 = vld [vmem:[%s307 + $0xf0] sm:$0xff]
        %v403 = vld [vmem:[%s307 + $0xf8] sm:$0xff]
        %v404 = vunpack.c.0.s8 %v372
        %v405 = vunpack.c.0.s8 %v373
        %v406 = vunpack.c.1.s8 %v372
        %v407 = vunpack.c.1.s8 %v373
        %v408 = vunpack.c.2.s8 %v372
        %v409 = vunpack.c.2.s8 %v373
        %v410 = vunpack.c.3.s8 %v372
        %v411 = vunpack.c.3.s8 %v373
        %v412 = vunpack.c.0.s8 %v374
        %v413 = vunpack.c.0.s8 %v375
        %v414 = vunpack.c.1.s8 %v374
        %v415 = vunpack.c.1.s8 %v375
        %v416 = vunpack.c.2.s8 %v374
        %v417 = vunpack.c.2.s8 %v375
        %v418 = vunpack.c.3.s8 %v374
        %v419 = vunpack.c.3.s8 %v375
        %v420 = vunpack.c.0.s8 %v376
        %v421 = vunpack.c.0.s8 %v377
        %v422 = vunpack.c.1.s8 %v376
        %v423 = vunpack.c.1.s8 %v377
        %v424 = vunpack.c.2.s8 %v376
        %v425 = vunpack.c.2.s8 %v377
        %v426 = vunpack.c.3.s8 %v376
        %v427 = vunpack.c.3.s8 %v377
        %v428 = vunpack.c.0.s8 %v378
        %v429 = vunpack.c.0.s8 %v379
        %v430 = vunpack.c.1.s8 %v378
        %v431 = vunpack.c.1.s8 %v379
        %v432 = vunpack.c.2.s8 %v378
        %v433 = vunpack.c.2.s8 %v379
        %v434 = vunpack.c.3.s8 %v378
        %v435 = vunpack.c.3.s8 %v379
        %v436 = vunpack.c.0.s8 %v380
        %v437 = vunpack.c.0.s8 %v381
        %v438 = vunpack.c.1.s8 %v380
        %v439 = vunpack.c.1.s8 %v381
        %v440 = vunpack.c.2.s8 %v380
        %v441 = vunpack.c.2.s8 %v381
        %v442 = vunpack.c.3.s8 %v380
        %v443 = vunpack.c.3.s8 %v381
        %v444 = vunpack.c.0.s8 %v382
        %v445 = vunpack.c.0.s8 %v383
        %v446 = vunpack.c.1.s8 %v382
        %v447 = vunpack.c.1.s8 %v383
        %v448 = vunpack.c.2.s8 %v382
        %v449 = vunpack.c.2.s8 %v383
        %v450 = vunpack.c.3.s8 %v382
        %v451 = vunpack.c.3.s8 %v383
        %v452 = vunpack.c.0.s8 %v384
        %v453 = vunpack.c.0.s8 %v385
        %v454 = vunpack.c.1.s8 %v384
        %v455 = vunpack.c.1.s8 %v385
        %v456 = vunpack.c.2.s8 %v384
        %v457 = vunpack.c.2.s8 %v385
        %v458 = vunpack.c.3.s8 %v384
        %v459 = vunpack.c.3.s8 %v385
        %v460 = vunpack.c.0.s8 %v386
        %v461 = vunpack.c.0.s8 %v387
        %v462 = vunpack.c.1.s8 %v386
        %v463 = vunpack.c.1.s8 %v387
        %v464 = vunpack.c.2.s8 %v386
        %v465 = vunpack.c.2.s8 %v387
        %v466 = vunpack.c.3.s8 %v386
        %v467 = vunpack.c.3.s8 %v387
        %v468 = vunpack.c.0.s8 %v388
        %v469 = vunpack.c.0.s8 %v389
        %v470 = vunpack.c.1.s8 %v388
        %v471 = vunpack.c.1.s8 %v389
        %v472 = vunpack.c.2.s8 %v388
        %v473 = vunpack.c.2.s8 %v389
        %v474 = vunpack.c.3.s8 %v388
        %v475 = vunpack.c.3.s8 %v389
        %v476 = vunpack.c.0.s8 %v390
        %v477 = vunpack.c.0.s8 %v391
        %v478 = vunpack.c.1.s8 %v390
        %v479 = vunpack.c.1.s8 %v391
        %v480 = vunpack.c.2.s8 %v390
        %v481 = vunpack.c.2.s8 %v391
        %v482 = vunpack.c.3.s8 %v390
        %v483 = vunpack.c.3.s8 %v391
        %v484 = vunpack.c.0.s8 %v392
        %v485 = vunpack.c.0.s8 %v393
        %v486 = vunpack.c.1.s8 %v392
        %v487 = vunpack.c.1.s8 %v393
        %v488 = vunpack.c.2.s8 %v392
        %v489 = vunpack.c.2.s8 %v393
        %v490 = vunpack.c.3.s8 %v392
        %v491 = vunpack.c.3.s8 %v393
        %v492 = vunpack.c.0.s8 %v394
        %v493 = vunpack.c.0.s8 %v395
        %v494 = vunpack.c.1.s8 %v394
        %v495 = vunpack.c.1.s8 %v395
        %v496 = vunpack.c.2.s8 %v394
        %v497 = vunpack.c.2.s8 %v395
        %v498 = vunpack.c.3.s8 %v394
        %v499 = vunpack.c.3.s8 %v395
        %v500 = vunpack.c.0.s8 %v396
        %v501 = vunpack.c.0.s8 %v397
        %v502 = vunpack.c.1.s8 %v396
        %v503 = vunpack.c.1.s8 %v397
        %v504 = vunpack.c.2.s8 %v396
        %v505 = vunpack.c.2.s8 %v397
        %v506 = vunpack.c.3.s8 %v396
        %v507 = vunpack.c.3.s8 %v397
        %v508 = vunpack.c.0.s8 %v398
        %v509 = vunpack.c.0.s8 %v399
        %v510 = vunpack.c.1.s8 %v398
        %v511 = vunpack.c.1.s8 %v399
        %v512 = vunpack.c.2.s8 %v398
        %v513 = vunpack.c.2.s8 %v399
        %v514 = vunpack.c.3.s8 %v398
        %v515 = vunpack.c.3.s8 %v399
        %v516 = vunpack.c.0.s8 %v400
        %v517 = vunpack.c.0.s8 %v401
        %v518 = vunpack.c.1.s8 %v400
        %v519 = vunpack.c.1.s8 %v401
        %v520 = vunpack.c.2.s8 %v400
        %v521 = vunpack.c.2.s8 %v401
        %v522 = vunpack.c.3.s8 %v400
        %v523 = vunpack.c.3.s8 %v401
        %v524 = vunpack.c.0.s8 %v402
        %v525 = vunpack.c.0.s8 %v403
        %v526 = vunpack.c.1.s8 %v402
        %v527 = vunpack.c.1.s8 %v403
        %v528 = vunpack.c.2.s8 %v402
        %v529 = vunpack.c.2.s8 %v403
        %v530 = vunpack.c.3.s8 %v402
        %v531 = vunpack.c.3.s8 %v403
        %v532 = vcvt.s32.f32 %v404
        %v533 = vcvt.s32.f32 %v405
        %v534 = vcvt.s32.f32 %v406
        %v535 = vcvt.s32.f32 %v407
        %v536 = vcvt.s32.f32 %v408
        %v537 = vcvt.s32.f32 %v409
        %v538 = vcvt.s32.f32 %v410
        %v539 = vcvt.s32.f32 %v411
        %v540 = vcvt.s32.f32 %v412
        %v541 = vcvt.s32.f32 %v413
        %v542 = vcvt.s32.f32 %v414
        %v543 = vcvt.s32.f32 %v415
        %v544 = vcvt.s32.f32 %v416
        %v545 = vcvt.s32.f32 %v417
        %v546 = vcvt.s32.f32 %v418
        %v547 = vcvt.s32.f32 %v419
        %v548 = vcvt.s32.f32 %v420
        %v549 = vcvt.s32.f32 %v421
        %v550 = vcvt.s32.f32 %v422
        %v551 = vcvt.s32.f32 %v423
        %v552 = vcvt.s32.f32 %v424
        %v553 = vcvt.s32.f32 %v425
        %v554 = vcvt.s32.f32 %v426
        %v555 = vcvt.s32.f32 %v427
        %v556 = vcvt.s32.f32 %v428
        %v557 = vcvt.s32.f32 %v429
        %v558 = vcvt.s32.f32 %v430
        %v559 = vcvt.s32.f32 %v431
        %v560 = vcvt.s32.f32 %v432
        %v561 = vcvt.s32.f32 %v433
        %v562 = vcvt.s32.f32 %v434
        %v563 = vcvt.s32.f32 %v435
        %v564 = vcvt.s32.f32 %v436
        %v565 = vcvt.s32.f32 %v437
        %v566 = vcvt.s32.f32 %v438
        %v567 = vcvt.s32.f32 %v439
        %v568 = vcvt.s32.f32 %v440
        %v569 = vcvt.s32.f32 %v441
        %v570 = vcvt.s32.f32 %v442
        %v571 = vcvt.s32.f32 %v443
        %v572 = vcvt.s32.f32 %v444
        %v573 = vcvt.s32.f32 %v445
        %v574 = vcvt.s32.f32 %v446
        %v575 = vcvt.s32.f32 %v447
        %v576 = vcvt.s32.f32 %v448
        %v577 = vcvt.s32.f32 %v449
        %v578 = vcvt.s32.f32 %v450
        %v579 = vcvt.s32.f32 %v451
        %v580 = vcvt.s32.f32 %v452
        %v581 = vcvt.s32.f32 %v453
        %v582 = vcvt.s32.f32 %v454
        %v583 = vcvt.s32.f32 %v455
        %v584 = vcvt.s32.f32 %v456
        %v585 = vcvt.s32.f32 %v457
        %v586 = vcvt.s32.f32 %v458
        %v587 = vcvt.s32.f32 %v459
        %v588 = vcvt.s32.f32 %v460
        %v589 = vcvt.s32.f32 %v461
        %v590 = vcvt.s32.f32 %v462
        %v591 = vcvt.s32.f32 %v463
        %v592 = vcvt.s32.f32 %v464
        %v593 = vcvt.s32.f32 %v465
        %v594 = vcvt.s32.f32 %v466
        %v595 = vcvt.s32.f32 %v467
        %v596 = vcvt.s32.f32 %v468
        %v597 = vcvt.s32.f32 %v469
        %v598 = vcvt.s32.f32 %v470
        %v599 = vcvt.s32.f32 %v471
        %v600 = vcvt.s32.f32 %v472
        %v601 = vcvt.s32.f32 %v473
        %v602 = vcvt.s32.f32 %v474
        %v603 = vcvt.s32.f32 %v475
        %v604 = vcvt.s32.f32 %v476
        %v605 = vcvt.s32.f32 %v477
        %v606 = vcvt.s32.f32 %v478
        %v607 = vcvt.s32.f32 %v479
        %v608 = vcvt.s32.f32 %v480
        %v609 = vcvt.s32.f32 %v481
        %v610 = vcvt.s32.f32 %v482
        %v611 = vcvt.s32.f32 %v483
        %v612 = vcvt.s32.f32 %v484
        %v613 = vcvt.s32.f32 %v485
        %v614 = vcvt.s32.f32 %v486
        %v615 = vcvt.s32.f32 %v487
        %v616 = vcvt.s32.f32 %v488
        %v617 = vcvt.s32.f32 %v489
        %v618 = vcvt.s32.f32 %v490
        %v619 = vcvt.s32.f32 %v491
        %v620 = vcvt.s32.f32 %v492
        %v621 = vcvt.s32.f32 %v493
        %v622 = vcvt.s32.f32 %v494
        %v623 = vcvt.s32.f32 %v495
        %v624 = vcvt.s32.f32 %v496
        %v625 = vcvt.s32.f32 %v497
        %v626 = vcvt.s32.f32 %v498
        %v627 = vcvt.s32.f32 %v499
        %v628 = vcvt.s32.f32 %v500
        %v629 = vcvt.s32.f32 %v501
        %v630 = vcvt.s32.f32 %v502
        %v631 = vcvt.s32.f32 %v503
        %v632 = vcvt.s32.f32 %v504
        %v633 = vcvt.s32.f32 %v505
        %v634 = vcvt.s32.f32 %v506
        %v635 = vcvt.s32.f32 %v507
        %v636 = vcvt.s32.f32 %v508
        %v637 = vcvt.s32.f32 %v509
        %v638 = vcvt.s32.f32 %v510
        %v639 = vcvt.s32.f32 %v511
        %v640 = vcvt.s32.f32 %v512
        %v641 = vcvt.s32.f32 %v513
        %v642 = vcvt.s32.f32 %v514
        %v643 = vcvt.s32.f32 %v515
        %v644 = vcvt.s32.f32 %v516
        %v645 = vcvt.s32.f32 %v517
        %v646 = vcvt.s32.f32 %v518
        %v647 = vcvt.s32.f32 %v519
        %v648 = vcvt.s32.f32 %v520
        %v649 = vcvt.s32.f32 %v521
        %v650 = vcvt.s32.f32 %v522
        %v651 = vcvt.s32.f32 %v523
        %v652 = vcvt.s32.f32 %v524
        %v653 = vcvt.s32.f32 %v525
        %v654 = vcvt.s32.f32 %v526
        %v655 = vcvt.s32.f32 %v527
        %v656 = vcvt.s32.f32 %v528
        %v657 = vcvt.s32.f32 %v529
        %v658 = vcvt.s32.f32 %v530
        %v659 = vcvt.s32.f32 %v531
        %v660 = vpack.c.bf16 %v534, %v532
        %v661 = vpack.c.bf16 %v535, %v533
        %v662 = vpack.c.bf16 %v538, %v536
        %v663 = vpack.c.bf16 %v539, %v537
        %v664 = vpack.c.bf16 %v542, %v540
        %v665 = vpack.c.bf16 %v543, %v541
        %v666 = vpack.c.bf16 %v546, %v544
        %v667 = vpack.c.bf16 %v547, %v545
        %v668 = vpack.c.bf16 %v550, %v548
        %v669 = vpack.c.bf16 %v551, %v549
        %v670 = vpack.c.bf16 %v554, %v552
        %v671 = vpack.c.bf16 %v555, %v553
        %v672 = vpack.c.bf16 %v558, %v556
        %v673 = vpack.c.bf16 %v559, %v557
        %v674 = vpack.c.bf16 %v562, %v560
        %v675 = vpack.c.bf16 %v563, %v561
        %v676 = vpack.c.bf16 %v566, %v564
        %v677 = vpack.c.bf16 %v567, %v565
        %v678 = vpack.c.bf16 %v570, %v568
        %v679 = vpack.c.bf16 %v571, %v569
        %v680 = vpack.c.bf16 %v574, %v572
        %v681 = vpack.c.bf16 %v575, %v573
        %v682 = vpack.c.bf16 %v578, %v576
        %v683 = vpack.c.bf16 %v579, %v577
        %v684 = vpack.c.bf16 %v582, %v580
        %v685 = vpack.c.bf16 %v583, %v581
        %v686 = vpack.c.bf16 %v586, %v584
        %v687 = vpack.c.bf16 %v587, %v585
        %v688 = vpack.c.bf16 %v590, %v588
        %v689 = vpack.c.bf16 %v591, %v589
        %v690 = vpack.c.bf16 %v594, %v592
        %v691 = vpack.c.bf16 %v595, %v593
        %v692 = vpack.c.bf16 %v598, %v596
        %v693 = vpack.c.bf16 %v599, %v597
        %v694 = vpack.c.bf16 %v602, %v600
        %v695 = vpack.c.bf16 %v603, %v601
        %v696 = vpack.c.bf16 %v606, %v604
        %v697 = vpack.c.bf16 %v607, %v605
        %v698 = vpack.c.bf16 %v610, %v608
        %v699 = vpack.c.bf16 %v611, %v609
        %v700 = vpack.c.bf16 %v614, %v612
        %v701 = vpack.c.bf16 %v615, %v613
        %v702 = vpack.c.bf16 %v618, %v616
        %v703 = vpack.c.bf16 %v619, %v617
        %v704 = vpack.c.bf16 %v622, %v620
        %v705 = vpack.c.bf16 %v623, %v621
        %v706 = vpack.c.bf16 %v626, %v624
        %v707 = vpack.c.bf16 %v627, %v625
        %v708 = vpack.c.bf16 %v630, %v628
        %v709 = vpack.c.bf16 %v631, %v629
        %v710 = vpack.c.bf16 %v634, %v632
        %v711 = vpack.c.bf16 %v635, %v633
        %v712 = vpack.c.bf16 %v638, %v636
        %v713 = vpack.c.bf16 %v639, %v637
        %v714 = vpack.c.bf16 %v642, %v640
        %v715 = vpack.c.bf16 %v643, %v641
        %v716 = vpack.c.bf16 %v646, %v644
        %v717 = vpack.c.bf16 %v647, %v645
        %v718 = vpack.c.bf16 %v650, %v648
        %v719 = vpack.c.bf16 %v651, %v649
        %v720 = vpack.c.bf16 %v654, %v652
        %v721 = vpack.c.bf16 %v655, %v653
        %v722 = vpack.c.bf16 %v658, %v656
        %v723 = vpack.c.bf16 %v659, %v657
        %v730 = vunpack.c.l.b16 %v366
        %v731 = vunpack.c.h.b16 %v366
        %v732 = vunpack.c.l.b16 %v367
        %v733 = vunpack.c.h.b16 %v367
        %v734 = vunpack.c.l.b16 %v368
        %v735 = vunpack.c.h.b16 %v368
        %v736 = vunpack.c.l.b16 %v369
        %v737 = vunpack.c.h.b16 %v369
        %v738 = vunpack.c.l.b16 %v370
        %v739 = vunpack.c.h.b16 %v370
        %v740 = vunpack.c.l.b16 %v371
        %v741 = vunpack.c.h.b16 %v371
        %v742 = vpack.c.b16 %v734, %v730
        %v743 = vpack.c.b16 %v735, %v731
        %v744 = vpack.c.b16 %v736, %v732
        %v745 = vpack.c.b16 %v737, %v733
        %v746 = vpack.c.b16 %v738, %v738
        %v747 = vpack.c.b16 %v739, %v739
        %v748 = vpack.c.b16 %v740, %v740
        %v749 = vpack.c.b16 %v741, %v741
        %758 = vmatpush.bf16.msra.mxu0 %v674
        %759 = vmatpush.bf16.msra.mxu0 %v672
        %760 = vmatpush.bf16.msra.mxu0 %v670
        %761 = vmatpush.bf16.msra.mxu0 %v668
        %762 = vmatpush.bf16.msra.mxu0 %v666
        %763 = vmatpush.bf16.msra.mxu0 %v664
        %764 = vmatpush.bf16.msra.mxu0 %v662
        %765 = vmatpush.bf16.msra.mxu0 %v660
        %766 = vmatmul.bf16.gmra.mxu0 %v742
        %v767 = vpop.f32.mrf.mxu0
        %v768 = vadd.f32 0.0, %v767
        %v769 = vpop.f32.mrf.mxu0
        %v770 = vadd.f32 0.0, %v769
        %771 = vmatmul.bf16.gmra.mxu0 %v746
        %v772 = vpop.f32.mrf.mxu0
        %v773 = vadd.f32 0.0, %v772
        %v774 = vpop.f32.mrf.mxu0
        %775 = vdwg.mxu0
        %776 = vmatpush.bf16.msra.mxu0 %v690
        %777 = vmatpush.bf16.msra.mxu0 %v688
        %778 = vmatpush.bf16.msra.mxu0 %v686
        %779 = vmatpush.bf16.msra.mxu0 %v684
        %780 = vmatpush.bf16.msra.mxu0 %v682
        %781 = vmatpush.bf16.msra.mxu0 %v680
        %782 = vmatpush.bf16.msra.mxu0 %v678
        %783 = vmatpush.bf16.msra.mxu0 %v676
        %784 = vmatmul.bf16.gmra.mxu0 %v743
        %v785 = vpop.f32.mrf.mxu0
        %v786 = vadd.f32 %v768, %v785
        %v787 = vpop.f32.mrf.mxu0
        %v788 = vadd.f32 %v770, %v787
        %789 = vmatmul.bf16.gmra.mxu0 %v747
        %v790 = vpop.f32.mrf.mxu0
        %v791 = vadd.f32 %v773, %v790
        %v792 = vpop.f32.mrf.mxu0
        %793 = vdwg.mxu0
        %794 = vmatpush.bf16.msra.mxu0 %v706
        %795 = vmatpush.bf16.msra.mxu0 %v704
        %796 = vmatpush.bf16.msra.mxu0 %v702
        %797 = vmatpush.bf16.msra.mxu0 %v700
        %798 = vmatpush.bf16.msra.mxu0 %v698
        %799 = vmatpush.bf16.msra.mxu0 %v696
        %800 = vmatpush.bf16.msra.mxu0 %v694
        %801 = vmatpush.bf16.msra.mxu0 %v692
        %802 = vmatmul.bf16.gmra.mxu0 %v744
        %v803 = vpop.f32.mrf.mxu0
        %v804 = vadd.f32 %v786, %v803
        %v805 = vpop.f32.mrf.mxu0
        %v806 = vadd.f32 %v788, %v805
        %807 = vmatmul.bf16.gmra.mxu0 %v748
        %v808 = vpop.f32.mrf.mxu0
        %v809 = vadd.f32 %v791, %v808
        %v810 = vpop.f32.mrf.mxu0
        %811 = vdwg.mxu0
        %812 = vmatpush.bf16.msra.mxu0 %v722
        %813 = vmatpush.bf16.msra.mxu0 %v720
        %814 = vmatpush.bf16.msra.mxu0 %v718
        %815 = vmatpush.bf16.msra.mxu0 %v716
        %816 = vmatpush.bf16.msra.mxu0 %v714
        %817 = vmatpush.bf16.msra.mxu0 %v712
        %818 = vmatpush.bf16.msra.mxu0 %v710
        %819 = vmatpush.bf16.msra.mxu0 %v708
        %820 = vmatmul.bf16.gmra.mxu0 %v745
        %v821 = vpop.f32.mrf.mxu0
        %v822 = vadd.f32 %v804, %v821
        %v823 = vpop.f32.mrf.mxu0
        %v824 = vadd.f32 %v806, %v823
        %825 = vmatmul.bf16.gmra.mxu0 %v749
        %v826 = vpop.f32.mrf.mxu0
        %v827 = vadd.f32 %v809, %v826
        %v828 = vpop.f32.mrf.mxu0
        %829 = vdwg.mxu0
        %830 = vmatpush.bf16.msra.mxu0 %v675
        %831 = vmatpush.bf16.msra.mxu0 %v673
        %832 = vmatpush.bf16.msra.mxu0 %v671
        %833 = vmatpush.bf16.msra.mxu0 %v669
        %834 = vmatpush.bf16.msra.mxu0 %v667
        %835 = vmatpush.bf16.msra.mxu0 %v665
        %836 = vmatpush.bf16.msra.mxu0 %v663
        %837 = vmatpush.bf16.msra.mxu0 %v661
        %838 = vmatmul.bf16.gmra.mxu0 %v742
        %v839 = vpop.f32.mrf.mxu0
        %v840 = vadd.f32 0.0, %v839
        %v841 = vpop.f32.mrf.mxu0
        %v842 = vadd.f32 0.0, %v841
        %843 = vmatmul.bf16.gmra.mxu0 %v746
        %v844 = vpop.f32.mrf.mxu0
        %v845 = vadd.f32 0.0, %v844
        %v846 = vpop.f32.mrf.mxu0
        %847 = vdwg.mxu0
        %848 = vmatpush.bf16.msra.mxu0 %v691
        %849 = vmatpush.bf16.msra.mxu0 %v689
        %850 = vmatpush.bf16.msra.mxu0 %v687
        %851 = vmatpush.bf16.msra.mxu0 %v685
        %852 = vmatpush.bf16.msra.mxu0 %v683
        %853 = vmatpush.bf16.msra.mxu0 %v681
        %854 = vmatpush.bf16.msra.mxu0 %v679
        %855 = vmatpush.bf16.msra.mxu0 %v677
        %856 = vmatmul.bf16.gmra.mxu0 %v743
        %v857 = vpop.f32.mrf.mxu0
        %v858 = vadd.f32 %v840, %v857
        %v859 = vpop.f32.mrf.mxu0
        %v860 = vadd.f32 %v842, %v859
        %861 = vmatmul.bf16.gmra.mxu0 %v747
        %v862 = vpop.f32.mrf.mxu0
        %v863 = vadd.f32 %v845, %v862
        %v864 = vpop.f32.mrf.mxu0
        %865 = vdwg.mxu0
        %866 = vmatpush.bf16.msra.mxu0 %v707
        %867 = vmatpush.bf16.msra.mxu0 %v705
        %868 = vmatpush.bf16.msra.mxu0 %v703
        %869 = vmatpush.bf16.msra.mxu0 %v701
        %870 = vmatpush.bf16.msra.mxu0 %v699
        %871 = vmatpush.bf16.msra.mxu0 %v697
        %872 = vmatpush.bf16.msra.mxu0 %v695
        %873 = vmatpush.bf16.msra.mxu0 %v693
        %874 = vmatmul.bf16.gmra.mxu0 %v744
        %v875 = vpop.f32.mrf.mxu0
        %v876 = vadd.f32 %v858, %v875
        %v877 = vpop.f32.mrf.mxu0
        %v878 = vadd.f32 %v860, %v877
        %879 = vmatmul.bf16.gmra.mxu0 %v748
        %v880 = vpop.f32.mrf.mxu0
        %v881 = vadd.f32 %v863, %v880
        %v882 = vpop.f32.mrf.mxu0
        %883 = vdwg.mxu0
        %884 = vmatpush.bf16.msra.mxu0 %v723
        %885 = vmatpush.bf16.msra.mxu0 %v721
        %886 = vmatpush.bf16.msra.mxu0 %v719
        %887 = vmatpush.bf16.msra.mxu0 %v717
        %888 = vmatpush.bf16.msra.mxu0 %v715
        %889 = vmatpush.bf16.msra.mxu0 %v713
        %890 = vmatpush.bf16.msra.mxu0 %v711
        %891 = vmatpush.bf16.msra.mxu0 %v709
        %892 = vmatmul.bf16.gmra.mxu0 %v745
        %v893 = vpop.f32.mrf.mxu0
        %v894 = vadd.f32 %v876, %v893
        %v895 = vpop.f32.mrf.mxu0
        %v896 = vadd.f32 %v878, %v895
        %897 = vmatmul.bf16.gmra.mxu0 %v749
        %v898 = vpop.f32.mrf.mxu0
        %v899 = vadd.f32 %v881, %v898
        %v900 = vpop.f32.mrf.mxu0
        %901 = vdwg.mxu0
        %p902 = scmp.eq.s32.totalorder %s33, 0
        // Predicated region
        $region49: #{tpu_custom_call.1} parent=39 // pred_check
          %p903 = pneg %p902
        $region50: #{tpu_custom_call.1} parent=39 // pred_check_branch
          %905 = sbr.rel (%p903) target = $region52
        $region51: #{tpu_custom_call.1} parent=39 // pred_region
          %906 = vst [vmem:[%s348] sm:$0xff] %v822
          %907 = vst [vmem:[%s348 + $0x8] sm:$0xff] %v894
          %908 = vst [vmem:[%s348 + $0x10] sm:$0xff] %v824
          %909 = vst [vmem:[%s348 + $0x18] sm:$0xff] %v896
          %910 = vst [vmem:[%s348 + $0x20] sm:$0xff] %v827
          %911 = vst [vmem:[%s348 + $0x28] sm:$0xff] %v899
        $region52: #{tpu_custom_call.1} parent=39 // pred_fallthru
          _
        %p912 = scmp.gt.s32.totalorder %s33, 0
        // Predicated region
        $region53: #{tpu_custom_call.1} parent=39 // pred_check
          %p913 = pneg %p912
        $region54: #{tpu_custom_call.1} parent=39 // pred_check_branch
          %915 = sbr.rel (%p913) target = $region56
        $region55: #{tpu_custom_call.1} parent=39 // pred_region
          %v916 = vld [vmem:[%s348] sm:$0xff]
          %v917 = vld [vmem:[%s348 + $0x8] sm:$0xff]
          %v918 = vld [vmem:[%s348 + $0x10] sm:$0xff]
          %v919 = vld [vmem:[%s348 + $0x18] sm:$0xff]
          %v920 = vld [vmem:[%s348 + $0x20] sm:$0xff]
          %v921 = vld [vmem:[%s348 + $0x28] sm:$0xff]
          %v922 = vadd.f32 %v916, %v822
          %v923 = vadd.f32 %v917, %v894
          %v924 = vadd.f32 %v918, %v824
          %v925 = vadd.f32 %v919, %v896
          %v926 = vadd.f32 %v920, %v827
          %v927 = vadd.f32 %v921, %v899
          %928 = vst [vmem:[%s348] sm:$0xff] %v922
          %929 = vst [vmem:[%s348 + $0x8] sm:$0xff] %v923
          %930 = vst [vmem:[%s348 + $0x10] sm:$0xff] %v924
          %931 = vst [vmem:[%s348 + $0x18] sm:$0xff] %v925
          %932 = vst [vmem:[%s348 + $0x20] sm:$0xff] %v926
          %933 = vst [vmem:[%s348 + $0x28] sm:$0xff] %v927
        $region56: #{tpu_custom_call.1} parent=39 // pred_fallthru
          _
        %p934 = scmp.eq.s32.totalorder %s33, 1
        // Predicated region
        $region57: #{tpu_custom_call.1} parent=39 // pred_check
          %p935 = pneg %p934
        $region58: #{tpu_custom_call.1} parent=39 // pred_check_branch
          %937 = sbr.rel (%p935) target = $region60
        $region59: #{tpu_custom_call.1} parent=39 // pred_region
          %s938 = sld [smem:[#allocation2]]
          %v939 = vld [vmem:[%s348] sm:$0xff]
          %v940 = vld [vmem:[%s348 + $0x8] sm:$0xff]
          %v941 = vld [vmem:[%s348 + $0x10] sm:$0xff]
          %v942 = vld [vmem:[%s348 + $0x18] sm:$0xff]
          %v943 = vld [vmem:[%s348 + $0x20] sm:$0xff]
          %v944 = vld [vmem:[%s348 + $0x28] sm:$0xff]
          %v945 = vstv %s938
          %v946 = vmul.f32 %v945, %v939
          %v947 = vmul.f32 %v945, %v940
          %v948 = vmul.f32 %v945, %v941
          %v949 = vmul.f32 %v945, %v942
          %v950 = vmul.f32 %v945, %v943
          %v951 = vmul.f32 %v945, %v944
          %v952 = vld [vmem:[%s353] sm:$0xff]
          %v953 = vld [vmem:[%s353 + $0x8] sm:$0xff]
          %v954 = vld [vmem:[%s353 + $0x10] sm:$0xff]
          %956 = vset.pattern.permute.xlu0 0
          %957 = vperm.xlu0 %956, %v952
          %v958 = vpop.permute.xlu0 %957
          %961 = vset.pattern.permute.xlu0 0
          %962 = vperm.xlu0 %961, %v953
          %v963 = vpop.permute.xlu0 %962
          %966 = vset.pattern.permute.xlu0 0
          %967 = vperm.xlu0 %966, %v954
          %v968 = vpop.permute.xlu0 %967
          %v970 = vadd.f32 %v946, %v958
          %v971 = vadd.f32 %v947, %v958
          %v972 = vadd.f32 %v948, %v963
          %v973 = vadd.f32 %v949, %v963
          %v974 = vadd.f32 %v950, %v968
          %v975 = vadd.f32 %v951, %v968
          %v976 = vld [vmem:[%s362] sm:$0x3]
          %v978 = vperm.slane %v976, 0
          %v979 = vperm.slane %v976, 1
          %v982 = vadd.f32 %v970, %v978
          %v983 = vadd.f32 %v971, %v979
          %v984 = vadd.f32 %v972, %v978
          %v985 = vadd.f32 %v973, %v979
          %v986 = vadd.f32 %v974, %v978
          %v987 = vadd.f32 %v975, %v979
          %988 = vst [vmem:[%s348] sm:$0xff] %v982
          %989 = vst [vmem:[%s348 + $0x8] sm:$0xff] %v983
          %990 = vst [vmem:[%s348 + $0x10] sm:$0xff] %v984
          %991 = vst [vmem:[%s348 + $0x18] sm:$0xff] %v985
          %992 = vst [vmem:[%s348 + $0x20] sm:$0xff] %v986
          %993 = vst [vmem:[%s348 + $0x28] sm:$0xff] %v987
        $region60: #{tpu_custom_call.1} parent=39 // pred_fallthru
          _
        %s994 = sand.u32 %s184, 1
        %s995 = scalar_lea.sflag [#allocation5], %s994
        %s996 = sand.u32 %s184, 1
        %s997 = smul.addr %s996, 48
        %s998 = scalar_lea.vmem [#allocation8], %s997
        // Predicated region
        $region61: #{tpu_custom_call.1} parent=39 // pred_check
          %p999 = pneg %p194
        $region62: #{tpu_custom_call.1} parent=39 // pred_check_branch
          %1001 = sbr.rel (%p999) target = $region64
        $region63: #{tpu_custom_call.1} parent=39 // pred_region
          %s1002 = smul.u32 3, %s31
          %s1003 = smul.u32 2, %s32
          %1005 = vsyncadd %s995, 0
          %s1006 = smul.addr %s1002, 4
          %s1007 = sadd.s32 %s1003, %s1006
          %s1008 = smul.addr %s1007, 8
          %s1009 = scalar_lea.hbm %s5, %s1008
          %s1010 = sshll.u32 %s998, 4
          %s1011 = int_to_ptr.vmem [resolvable:$true] %s1010
          %s1012 = sshll.u32 %s1009, 4
          %s1013 = int_to_ptr.hbm [resolvable:$true] %s1012
          %1018 = dma.vmem_to_hbm [thread:$0]  %s1011, 768, %s1013, %s995, 256, 512, 16
        $region64: #{tpu_custom_call.1} parent=39 // pred_fallthru
          _
      $region40: #{tpu_custom_call.1} parent=5 // pred_fallthru
        _
      %p1019 = scmp.le.s32.totalorder 2, %s21
      // Predicated region
      $region65: #{tpu_custom_call.1} parent=5 // pred_check
        %p1020 = pneg %p1019
      $region66: #{tpu_custom_call.1} parent=5 // pred_check_branch
        %1022 = sbr.rel (%p1020) target = $region68
      $region67: #{tpu_custom_call.1} parent=5 // pred_region
        %s1023 = ssub.s32 %s21, 2
        // Predicated region
        $region69: #{tpu_custom_call.1} parent=67 // pred_check
          %p1024 = pneg %p200
        $region70: #{tpu_custom_call.1} parent=67 // pred_check_branch
          %1026 = sbr.rel (%p1024) target = $region72
        $region71: #{tpu_custom_call.1} parent=67 // pred_region
          %s1027 = sand.u32 %s185, 1
          %s1028 = scalar_lea.sflag [#allocation5], %s1027
          %s1029 = sand.u32 %s185, 1
          %s1030 = smul.addr %s1029, 48
          %s1031 = scalar_lea.vmem [#allocation8], %s1030
          %1033 = dma.done %s1028, 768
        $region72: #{tpu_custom_call.1} parent=67 // pred_fallthru
          _
      $region68: #{tpu_custom_call.1} parent=5 // pred_fallthru
        _
    $region6: #{tpu_custom_call.1} parent=1 // loop_footer
      %s25 = sadd.s32 1, %s21
    $region7: #{tpu_custom_call.1} parent=1 // loop_footer_branch
      %20 = sbr.rel target = $region3
    $region8: #{tpu_custom_call.1} parent=1 // loop_exit
      _
    %1034 = vsyncpa [#allocation4], 1
    %s1035 = scalar_lea.sflag [#allocation4], 1
    %1036 = vsyncpa %s1035, 1
    %1037 = vsyncpa [#allocation7], 1
    %s1038 = scalar_lea.sflag [#allocation7], 1
    %1039 = vsyncpa %s1038, 1
    %1040 = vsyncpa [#allocation5], 1
    %s1041 = scalar_lea.sflag [#allocation5], 1
    %1042 = vsyncpa %s1041, 1

</llo_original>
